<compile_context>
chip_gen: v7x
topology: tpu7x:2x2x1
jax: 0.10.0
libtpu: 0.0.40
codegen_flags: <defaults>
</compile_context>

<pallas_src>
import functools

import jax
import jax.numpy as jnp
from jax.experimental import pallas as pl
from jax.experimental.pallas import tpu as pltpu


def _graphormer_head_kernel(x_ref, seg_ref, w_ref, out_ref, acc_ref, *,
                            num_nodes, tile_n, tiles_per_core, block_offset):
    core = pl.program_id(0)
    step = pl.program_id(1)

    @pl.when(step == 0)
    def _init():
        acc_ref[...] = jnp.zeros_like(acc_ref)

    # ---- LayerNorm (normalization only; affine folded into W'/b' outside) ----
    x = x_ref[...]                                        # [tile_n, D] f32
    mean = jnp.mean(x, axis=-1, keepdims=True)
    xc = x - mean
    var = jnp.mean(xc * xc, axis=-1, keepdims=True)
    x_ln = xc * jax.lax.rsqrt(var + 1e-5)

    # ---- Linear first (mean pooling commutes with the linear map) ----
    # [tile_n, D] @ [D, O] with bf16 operands, f32 MXU accumulation.
    y = jnp.dot(x_ln.astype(jnp.bfloat16), w_ref[...],
                preferred_element_type=jnp.float32)       # [tile_n, O] f32

    # ---- Tile-local one-hot segment-sum into the per-core accumulator ----
    seg = seg_ref[...]                                    # [1, tile_n] int32
    b_pad = acc_ref.shape[0]
    graph_ids = jax.lax.broadcasted_iota(jnp.int32, (b_pad, tile_n), 0)
    onehot = (graph_ids == seg).astype(jnp.bfloat16)      # sentinel id -> all-zero column

    block_global = core * block_offset + step             # actual x block index
    tile_lo = block_global * tile_n                       # first global row in this tile
    row_lo = core * (tiles_per_core * tile_n)             # first row this core may count
    # Mask needed only for (a) the ragged final tile (garbage rows past num_nodes) and
    # (b) the one overlap tile a 2-core odd split re-reads.  Gate it so full interior
    # tiles never pay the [tile_n, O] where().
    needs_mask = jnp.logical_or(tile_lo + tile_n > num_nodes, tile_lo < row_lo)

    def _accumulate(y_bf16):
        acc_ref[...] += jnp.dot(onehot, y_bf16,
                                preferred_element_type=jnp.float32)   # [B_pad, O]

    @pl.when(needs_mask)
    def _masked():
        rows = tile_lo + jax.lax.broadcasted_iota(jnp.int32, (tile_n, 1), 0)
        valid = jnp.logical_and(rows >= row_lo, rows < num_nodes)
        # Zero garbage / duplicated rows so NaN/Inf can never poison the accumulator.
        _accumulate(jnp.where(valid, y, 0.0).astype(jnp.bfloat16))

    @pl.when(jnp.logical_not(needs_mask))
    def _unmasked():
        _accumulate(y.astype(jnp.bfloat16))

    @pl.when(step == pl.num_programs(1) - 1)
    def _finalize():
        out_ref[...] = acc_ref[...][None]                 # per-core partial sum


def _round_up(x, m):
    return (x + m - 1) // m * m


def _hw_config():
    try:
        kind = jax.devices()[0].device_kind.lower()
    except Exception:
        kind = ""
    if "v7" in kind or "tpu7" in kind:
        # v7x: 64 MiB physical VMEM (keep scoped limit <= 32 MiB), 2 TensorCores/chip.
        return dict(node_budget=12 * 1024 * 1024, vmem_limit=32 * 1024 * 1024,
                    num_cores=2)
    if "v5" in kind or "v6" in kind:
        # v5e / v6e: 128 MiB physical VMEM, single TensorCore.
        return dict(node_budget=24 * 1024 * 1024, vmem_limit=64 * 1024 * 1024,
                    num_cores=1)
    # Unknown chip: conservative defaults.
    return dict(node_budget=12 * 1024 * 1024, vmem_limit=32 * 1024 * 1024,
                num_cores=1)


def _choose_tile_n(n, d, node_budget):
    # Node-proportional VMEM per row: double-buffered f32 x tile plus single-buffered
    # LayerNorm temporaries (f32 x_ln and its bf16 MXU copy)  ->  ~14 * D bytes / row.
    bytes_per_row = 2 * 4 * d + 4 * d + 2 * d
    rows = node_budget // max(bytes_per_row, 1)
    rows = max(min(rows, 32768), 512)                 # byte-based, >= 512 rows for any D
    tile = max((rows // 128) * 128, 128)              # lane-aligned (seg tile last dim)
    tile = min(tile, _round_up(max(n, 1), 128))       # never much larger than N itself
    return max(tile, 128)


def graphormer_head(x, batch_idx, gamma, beta, w, b, num_graphs,
                    tile_n=None, num_cores=None):
    """Forward of GraphormerHead: Linear(mean_pool(LayerNorm(x), batch_idx)).

    x: [N, D] node features, batch_idx: [N] int graph ids in [0, num_graphs),
    gamma/beta: [D] LayerNorm affine, w: [D, O], b: [O].  Returns [num_graphs, O].
    """
    n, d = x.shape
    o = w.shape[1]
    hw = _hw_config()
    b_pad = _round_up(max(int(num_graphs), 1), 8)

    if tile_n is None:
        tile_n = _choose_tile_n(n, d, hw["node_budget"])
    if num_cores is None:
        num_cores = hw["num_cores"]
    num_tiles = int(pl.cdiv(n, tile_n))
    num_cores = max(1, min(int(num_cores), num_tiles, 2))
    tiles_per_core = int(pl.cdiv(num_tiles, num_cores))
    # Core c starts at block c*block_offset; for an odd split core 1 overlaps core 0 by
    # one block (de-duplicated in-kernel), so no x block index is ever out of range.
    block_offset = num_tiles - tiles_per_core

    x_f32 = x.astype(jnp.float32)                          # passed through un-padded
    seg_len = num_tiles * tile_n
    seg = jnp.full((1, seg_len), b_pad, jnp.int32).at[0, :n].set(
        batch_idx.astype(jnp.int32))

    # Fold the LayerNorm affine into the Linear:  (x_n*g + be) @ W + b
    #   = x_n @ (g[:,None]*W) + (be @ W + b)
    w_f32 = w.astype(jnp.float32)
    w_eff = (gamma.astype(jnp.float32)[:, None] * w_f32).astype(jnp.bfloat16)  # [D, O]
    b_eff = (b.astype(jnp.float32) + beta.astype(jnp.float32) @ w_f32).reshape(1, o)

    # Per-graph 1/count for the mean pooling (tiny segment sum done once in XLA).
    counts = jnp.zeros((b_pad,), jnp.float32).at[batch_idx.astype(jnp.int32)].add(1.0)
    inv_counts = jnp.where(counts > 0, 1.0 / counts, 0.0).reshape(b_pad, 1)

    grid_spec = pltpu.PrefetchScalarGridSpec(
        num_scalar_prefetch=0,
        grid=(num_cores, tiles_per_core),
        in_specs=[
            pl.BlockSpec((tile_n, d), lambda c, i: (c * block_offset + i, 0)),   # x tile
            pl.BlockSpec((1, tile_n), lambda c, i: (0, c * block_offset + i)),   # graph ids
            pl.BlockSpec((d, o), lambda c, i: (0, 0)),                           # W' resident
        ],
        out_specs=pl.BlockSpec((1, b_pad, o), lambda c, i: (c, 0, 0)),
        scratch_shapes=[pltpu.VMEM((b_pad, o), jnp.float32)],
    )

    cost = pl.CostEstimate(
        flops=int(2 * n * d * o + 2 * b_pad * n * o + 7 * n * d),
        transcendentals=int(n),
        bytes_accessed=int(n * d * 4 + seg_len * 4 + d * o * 2
                           + num_cores * b_pad * o * 4),
    )

    kernel = functools.partial(_graphormer_head_kernel, num_nodes=n, tile_n=tile_n,
                               tiles_per_core=tiles_per_core, block_offset=block_offset)

    partials = pl.pallas_call(
        kernel,
        out_shape=jax.ShapeDtypeStruct((num_cores, b_pad, o), jnp.float32),
        grid_spec=grid_spec,
        compiler_params=pltpu.CompilerParams(
            dimension_semantics=("parallel", "arbitrary"),
            vmem_limit_bytes=hw["vmem_limit"]),
        cost_estimate=cost,
    )(x_f32, seg, w_eff)

    # Combine per-core partial sums, turn sums into means, add the folded bias.
    pooled = jnp.sum(partials, axis=0) * inv_counts + b_eff        # [B_pad, O]
    return pooled[:num_graphs]


def _reference(x, batch_idx, gamma, beta, w, b, num_graphs):
    mean = jnp.mean(x, axis=-1, keepdims=True)
    var = jnp.mean((x - mean) ** 2, axis=-1, keepdims=True)
    x_ln = (x - mean) / jnp.sqrt(var + 1e-5) * gamma + beta
    onehot = (jnp.arange(num_graphs)[:, None] == batch_idx[None, :]).astype(jnp.float32)
    emb = (onehot @ x_ln) / jnp.maximum(onehot.sum(-1, keepdims=True), 1.0)
    return emb @ w + b


if __name__ == "__main__":
    key = jax.random.PRNGKey(0)
    k_x, k_w, k_b, k_g, k_be, k_x2 = jax.random.split(key, 6)

    # ---- Test 1: tiny batch (single tile, ragged block, default tile sizing) ----
    N, D, B, O = 8, 32, 2, 1
    x = jax.random.normal(k_x, (N, D), dtype=jnp.float32)
    batch_idx = jnp.array([0, 0, 0, 0, 1, 1, 1, 1], dtype=jnp.int32)

    gamma = 1.0 + 0.1 * jax.random.normal(k_g, (D,), dtype=jnp.float32)
    beta = 0.1 * jax.random.normal(k_be, (D,), dtype=jnp.float32)
    w = jax.random.normal(k_w, (D, O), dtype=jnp.float32) * (1.0 / jnp.sqrt(D))
    b = jax.random.normal(k_b, (O,), dtype=jnp.float32) * 0.01

    pred = graphormer_head(x, batch_idx, gamma, beta, w, b, num_graphs=B)
    jax.block_until_ready(pred)
    ref = _reference(x, batch_idx, gamma, beta, w, b, B)
    assert pred.shape == (B, O)
    # bf16 MXU operands with f32 accumulation -> relaxed tolerance vs f32 reference.
    assert jnp.allclose(pred, ref, atol=5e-2, rtol=5e-2), (pred, ref)

    # ---- Test 2: multi-tile path (grid > 1, unpadded ragged x, B not multiple of 8) ----
    N2, B2 = 300, 3
    x2 = jax.random.normal(k_x2, (N2, D), dtype=jnp.float32)
    batch_idx2 = jnp.repeat(jnp.arange(B2, dtype=jnp.int32), N2 // B2)

    pred2 = graphormer_head(x2, batch_idx2, gamma, beta, w, b,
                            num_graphs=B2, tile_n=128)
    jax.block_until_ready(pred2)
    ref2 = _reference(x2, batch_idx2, gamma, beta, w, b, B2)
    assert pred2.shape == (B2, O)
    assert jnp.allclose(pred2, ref2, atol=5e-2, rtol=5e-2), (pred2, ref2)

    # ---- Test 3: forced 2-core split with an odd tile count (overlap/dedup path, the
    #      same code path v7x uses; runs sequentially but correctly on 1-TC chips) ----
    pred3 = graphormer_head(x2, batch_idx2, gamma, beta, w, b,
                            num_graphs=B2, tile_n=128, num_cores=2)
    jax.block_until_ready(pred3)
    assert pred3.shape == (B2, O)
    assert jnp.allclose(pred3, ref2, atol=5e-2, rtol=5e-2), (pred3, ref2)

    print("KERNEL_OK")
</pallas_src>

<mosaic_0001>
module attributes {stable_mosaic.version = 11 : i64} {
  func.func @_graphormer_head_kernel(%arg0: i32, %arg1: i32, %arg2: memref<128x32xf32, #tpu.memory_space<vmem>>, %arg3: memref<1x128xi32, #tpu.memory_space<vmem>>, %arg4: memref<32x1xbf16, #tpu.memory_space<vmem>>, %arg5: memref<1x8x1xf32, #tpu.memory_space<vmem>>, %arg6: memref<8x1xf32, #tpu.memory_space<vmem>>) attributes {dimension_semantics = [#tpu.dimension_semantics<parallel>, #tpu.dimension_semantics<arbitrary>], iteration_bounds = array<i64: 1, 1>, scalar_prefetch = 0 : i64, scratch_operands = 1 : i64, tpu.core_type = #tpu.core_type<tc>, window_params = [{transform_indices = @transform_0, window_bounds = array<i64: 128, 32>}, {transform_indices = @transform_1, window_bounds = array<i64: 1, 128>}, {pipeline_mode = #tpu.pipeline_mode<synchronous>, transform_indices = @transform_2, window_bounds = array<i64: 32, 1>}, {transform_indices = @transform_3, window_bounds = array<i64: 1, 8, 1>}]} {
    %c0_i32 = arith.constant 0 : i32
    %0 = arith.cmpi eq, %arg1, %c0_i32 : i32
    %1 = arith.extui %0 : i1 to i32
    %c0_i32_0 = arith.constant 0 : i32
    %2 = arith.cmpi ne, %1, %c0_i32_0 : i32
    scf.if %2 {
      %cst_18 = arith.constant 0.000000e+00 : f32
      %46 = vector.broadcast %cst_18 : f32 to vector<8x1xf32>
      %c0_19 = arith.constant 0 : index
      %c0_20 = arith.constant 0 : index
      %47 = vector.load %arg6[%c0_19, %c0_20] : memref<8x1xf32, #tpu.memory_space<vmem>>, vector<8x1xf32>
      tpu.vector_store %arg6[%c0_19, %c0_20], %46 {strides = array<i32>} : memref<8x1xf32, #tpu.memory_space<vmem>>, vector<8x1xf32>,
    } else {
    }
    %c0 = arith.constant 0 : index
    %c0_1 = arith.constant 0 : index
    %3 = vector.load %arg2[%c0, %c0_1] : memref<128x32xf32, #tpu.memory_space<vmem>>, vector<128x32xf32>
    %cst = arith.constant dense<0.000000e+00> : vector<128xf32>
    %4 = vector.multi_reduction <add>, %3, %cst [1] : vector<128x32xf32> to vector<128xf32>
    %5 = vector.shape_cast %4 : vector<128xf32> to vector<128x1xf32>
    %cst_2 = arith.constant 3.200000e+01 : f32
    %6 = vector.broadcast %cst_2 : f32 to vector<128x1xf32>
    %7 = arith.divf %5, %6 : vector<128x1xf32>
    %8 = vector.broadcast %7 : vector<128x1xf32> to vector<128x32xf32>
    %9 = arith.subf %3, %8 : vector<128x32xf32>
    %10 = arith.mulf %9, %9 : vector<128x32xf32>
    %cst_3 = arith.constant dense<0.000000e+00> : vector<128xf32>
    %11 = vector.multi_reduction <add>, %10, %cst_3 [1] : vector<128x32xf32> to vector<128xf32>
    %12 = vector.shape_cast %11 : vector<128xf32> to vector<128x1xf32>
    %cst_4 = arith.constant 3.200000e+01 : f32
    %13 = vector.broadcast %cst_4 : f32 to vector<128x1xf32>
    %14 = arith.divf %12, %13 : vector<128x1xf32>
    %cst_5 = arith.constant 9.99999974E-6 : f32
    %15 = vector.broadcast %cst_5 : f32 to vector<128x1xf32>
    %16 = arith.addf %14, %15 : vector<128x1xf32>
    %17 = math.rsqrt %16 : vector<128x1xf32>
    %18 = vector.broadcast %17 : vector<128x1xf32> to vector<128x32xf32>
    %19 = arith.mulf %9, %18 : vector<128x32xf32>
    %20 = arith.truncf %19 : vector<128x32xf32> to vector<128x32xbf16>
    %c0_6 = arith.constant 0 : index
    %c0_7 = arith.constant 0 : index
    %21 = vector.load %arg4[%c0_6, %c0_7] : memref<32x1xbf16, #tpu.memory_space<vmem>>, vector<32x1xbf16>
    %cst_8 = arith.constant dense<0.000000e+00> : vector<128x1xf32>
    %22 = tpu.matmul %20, %21, %cst_8 {dimension_numbers = #tpu.dot_dimension_numbers<[1], [0], [0], [1], [0, 0, 1, 1], [], []>} : vector<128x32xbf16>, vector<32x1xbf16>, vector<128x1xf32> -> vector<128x1xf32>
    %c0_9 = arith.constant 0 : index
    %c0_10 = arith.constant 0 : index
    %23 = vector.load %arg3[%c0_9, %c0_10] : memref<1x128xi32, #tpu.memory_space<vmem>>, vector<1x128xi32>
    %24 = tpu.iota {dimensions = array<i32: 0>} : vector<8x128xi32>
    %25 = vector.broadcast %23 : vector<1x128xi32> to vector<8x128xi32>
    %26 = arith.cmpi eq, %24, %25 : vector<8x128xi32>
    %27 = arith.extui %26 : vector<8x128xi1> to vector<8x128xi32>
    %28 = arith.sitofp %27 : vector<8x128xi32> to vector<8x128xf32>
    %29 = arith.truncf %28 : vector<8x128xf32> to vector<8x128xbf16>
    %c0_i32_11 = arith.constant 0 : i32
    %30 = arith.muli %arg0, %c0_i32_11 : i32
    %31 = arith.addi %30, %arg1 : i32
    %c128_i32 = arith.constant 128 : i32
    %32 = arith.muli %31, %c128_i32 : i32
    %c128_i32_12 = arith.constant 128 : i32
    %33 = arith.muli %arg0, %c128_i32_12 : i32
    %c128_i32_13 = arith.constant 128 : i32
    %34 = arith.addi %32, %c128_i32_13 : i32
    %c8_i32 = arith.constant 8 : i32
    %35 = arith.cmpi sgt, %34, %c8_i32 : i32
    %36 = arith.cmpi slt, %32, %33 : i32
    %37 = arith.ori %35, %36 : i1
    %38 = arith.extui %37 : i1 to i32
    %c0_i32_14 = arith.constant 0 : i32
    %39 = arith.cmpi ne, %38, %c0_i32_14 : i32
    scf.if %39 {
      %46 = tpu.iota {dimensions = array<i32: 0>} : vector<128x1xi32>
      %47 = vector.broadcast %32 : i32 to vector<128x1xi32>
      %48 = arith.addi %47, %46 : vector<128x1xi32>
      %49 = vector.broadcast %33 : i32 to vector<128x1xi32>
      %50 = arith.cmpi sge, %48, %49 : vector<128x1xi32>
      %c8_i32_18 = arith.constant 8 : i32
      %51 = vector.broadcast %c8_i32_18 : i32 to vector<128x1xi32>
      %52 = arith.cmpi slt, %48, %51 : vector<128x1xi32>
      %53 = arith.andi %50, %52 : vector<128x1xi1>
      %cst_19 = arith.constant 0.000000e+00 : f32
      %54 = vector.broadcast %cst_19 : f32 to vector<128x1xf32>
      %55 = arith.select %53, %22, %54 : vector<128x1xi1>, vector<128x1xf32>
      %56 = arith.truncf %55 : vector<128x1xf32> to vector<128x1xbf16>
      %c0_20 = arith.constant 0 : index
      %c0_21 = arith.constant 0 : index
      %57 = vector.load %arg6[%c0_20, %c0_21] : memref<8x1xf32, #tpu.memory_space<vmem>>, vector<8x1xf32>
      %cst_22 = arith.constant dense<0.000000e+00> : vector<8x1xf32>
      %58 = tpu.matmul %29, %56, %cst_22 {dimension_numbers = #tpu.dot_dimension_numbers<[1], [0], [0], [1], [0, 0, 1, 1], [], []>} : vector<8x128xbf16>, vector<128x1xbf16>, vector<8x1xf32> -> vector<8x1xf32>
      %59 = arith.addf %57, %58 : vector<8x1xf32>
      %c0_23 = arith.constant 0 : index
      %c0_24 = arith.constant 0 : index
      %60 = vector.load %arg6[%c0_23, %c0_24] : memref<8x1xf32, #tpu.memory_space<vmem>>, vector<8x1xf32>
      tpu.vector_store %arg6[%c0_23, %c0_24], %59 {strides = array<i32>} : memref<8x1xf32, #tpu.memory_space<vmem>>, vector<8x1xf32>,
    } else {
    }
    %true = arith.constant true
    %40 = arith.xori %37, %true : i1
    %41 = arith.extui %40 : i1 to i32
    %c0_i32_15 = arith.constant 0 : i32
    %42 = arith.cmpi ne, %41, %c0_i32_15 : i32
    scf.if %42 {
      %46 = arith.truncf %22 : vector<128x1xf32> to vector<128x1xbf16>
      %c0_18 = arith.constant 0 : index
      %c0_19 = arith.constant 0 : index
      %47 = vector.load %arg6[%c0_18, %c0_19] : memref<8x1xf32, #tpu.memory_space<vmem>>, vector<8x1xf32>
      %cst_20 = arith.constant dense<0.000000e+00> : vector<8x1xf32>
      %48 = tpu.matmul %29, %46, %cst_20 {dimension_numbers = #tpu.dot_dimension_numbers<[1], [0], [0], [1], [0, 0, 1, 1], [], []>} : vector<8x128xbf16>, vector<128x1xbf16>, vector<8x1xf32> -> vector<8x1xf32>
      %49 = arith.addf %47, %48 : vector<8x1xf32>
      %c0_21 = arith.constant 0 : index
      %c0_22 = arith.constant 0 : index
      %50 = vector.load %arg6[%c0_21, %c0_22] : memref<8x1xf32, #tpu.memory_space<vmem>>, vector<8x1xf32>
      tpu.vector_store %arg6[%c0_21, %c0_22], %49 {strides = array<i32>} : memref<8x1xf32, #tpu.memory_space<vmem>>, vector<8x1xf32>,
    } else {
    }
    %c0_i32_16 = arith.constant 0 : i32
    %43 = arith.cmpi eq, %arg1, %c0_i32_16 : i32
    %44 = arith.extui %43 : i1 to i32
    %c0_i32_17 = arith.constant 0 : i32
    %45 = arith.cmpi ne, %44, %c0_i32_17 : i32
    scf.if %45 {
      %c0_18 = arith.constant 0 : index
      %c0_19 = arith.constant 0 : index
      %46 = vector.load %arg6[%c0_18, %c0_19] : memref<8x1xf32, #tpu.memory_space<vmem>>, vector<8x1xf32>
      %47 = vector.shape_cast %46 : vector<8x1xf32> to vector<1x8x1xf32>
      %c0_20 = arith.constant 0 : index
      %c0_21 = arith.constant 0 : index
      %c0_22 = arith.constant 0 : index
      %48 = vector.load %arg5[%c0_20, %c0_21, %c0_22] : memref<1x8x1xf32, #tpu.memory_space<vmem>>, vector<1x8x1xf32>
      tpu.vector_store %arg5[%c0_20, %c0_21, %c0_22], %47 {strides = array<i32>} : memref<1x8x1xf32, #tpu.memory_space<vmem>>, vector<1x8x1xf32>,
    } else {
    }
    return
  }
  func.func @transform_0(%arg0: i32, %arg1: i32) -> (i32, i32) {
    %c0_i32 = arith.constant 0 : i32
    %0 = arith.muli %arg0, %c0_i32 : i32
    %1 = arith.addi %0, %arg1 : i32
    %c0_i32_0 = arith.constant 0 : i32
    %c0_i32_1 = arith.constant 0 : i32
    return %1, %c0_i32_0 : i32, i32
  }
  func.func @transform_1(%arg0: i32, %arg1: i32) -> (i32, i32) {
    %c0_i32 = arith.constant 0 : i32
    %0 = arith.muli %arg0, %c0_i32 : i32
    %1 = arith.addi %0, %arg1 : i32
    %c0_i32_0 = arith.constant 0 : i32
    %c0_i32_1 = arith.constant 0 : i32
    return %c0_i32_0, %1 : i32, i32
  }
  func.func @transform_2(%arg0: i32, %arg1: i32) -> (i32, i32) {
    %c0_i32 = arith.constant 0 : i32
    %c0_i32_0 = arith.constant 0 : i32
    %c0_i32_1 = arith.constant 0 : i32
    return %c0_i32, %c0_i32_0 : i32, i32
  }
  func.func @transform_3(%arg0: i32, %arg1: i32) -> (i32, i32, i32) {
    %c0_i32 = arith.constant 0 : i32
    %c0_i32_0 = arith.constant 0 : i32
    %c0_i32_1 = arith.constant 0 : i32
    return %arg0, %c0_i32, %c0_i32_0 : i32, i32, i32
  }
}

</mosaic_0001>

<llo_original>
// kernel: tpu_custom_call.1
$region0: #{tpu_custom_call.1}
  #allocation0 [shape = 'u32[]', space=smem, size = 0x4, offset = 0x4, fixed_abs, tag = 'smem constant byte address 0x4 - core index']
  #allocation1 [shape = 'u32[144,128]{1,0:T(1,128)}', space=vmem, size = 0x12000, scoped, tag = 'internal scratch']
  #allocation2 [shape = 'f32[8,1]{1,0:T(8,128)}', space=vmem, size = 0x1000, scoped, tag = 'scratch operand']
  %s0 = inlined_call_operand.vmem [shape: f32[8,32], index: 0, kind: input, shape index: {}]
  %s1 = inlined_call_operand.vmem [shape: s32[1,128], index: 1, kind: input, shape index: {}]
  %s2 = inlined_call_operand.vmem [shape: bf16[32,1], index: 2, kind: input, shape index: {}]
  %s3 = inlined_call_operand.vmem [shape: f32[1,8,1], index: 3, kind: output, shape index: {}]
  %s4 = sld [smem:[#allocation0]]
  $region38: #{tpu_custom_call.1} parent=0
    _
  %s6 = ssub.s32 1, %s4
  %s7 = scalar_select 0, %s6, %s4
  // Predicated region
  $region2: #{tpu_custom_call.1} parent=0 // pred_check
    _
  $region3: #{tpu_custom_call.1} parent=0 // pred_check_branch
    %9 = sbr.rel (0) target = $region5
  $region4: #{tpu_custom_call.1} parent=0 // pred_region
    _
  $region5: #{tpu_custom_call.1} parent=0 // pred_fallthru
    _
  // Predicated region
  $region6: #{tpu_custom_call.1} parent=0 // pred_check
    _
  $region7: #{tpu_custom_call.1} parent=0 // pred_check_branch
    %11 = sbr.rel (0) target = $region9
  $region8: #{tpu_custom_call.1} parent=0 // pred_region
    _
  $region9: #{tpu_custom_call.1} parent=0 // pred_fallthru
    _
  // Predicated region
  $region10: #{tpu_custom_call.1} parent=0 // pred_check
    _
  $region11: #{tpu_custom_call.1} parent=0 // pred_check_branch
    %13 = sbr.rel (0) target = $region13
  $region12: #{tpu_custom_call.1} parent=0 // pred_region
    _
  $region13: #{tpu_custom_call.1} parent=0 // pred_fallthru
    _
  %p15 = scmp.eq.s32.totalorder 0, 0
  // Predicated region
  $region14: #{tpu_custom_call.1} parent=0 // pred_check
    %p16 = pneg %p15
  $region15: #{tpu_custom_call.1} parent=0 // pred_check_branch
    %18 = sbr.rel (%p16) target = $region17
  $region16: #{tpu_custom_call.1} parent=0 // pred_region
    %vm19 = vcmask 7168
    %20 = vst.msk [vmem:[#allocation2] sm:$0xff] %vm19, 0.0
  $region17: #{tpu_custom_call.1} parent=0 // pred_fallthru
    _
  %v21 = vld [vmem:[%s0] sm:$0xff]
  %v22 = vld [vmem:[%s0 + $0x8] sm:$0xff]
  %v23 = vld [vmem:[%s0 + $0x10] sm:$0xff]
  %v24 = vld [vmem:[%s0 + $0x18] sm:$0xff]
  %v25 = vld [vmem:[%s0 + $0x20] sm:$0xff]
  %v26 = vld [vmem:[%s0 + $0x28] sm:$0xff]
  %v27 = vld [vmem:[%s0 + $0x30] sm:$0xff]
  %v28 = vld [vmem:[%s0 + $0x38] sm:$0xff]
  %v29 = vld [vmem:[%s0 + $0x40] sm:$0xff]
  %v30 = vld [vmem:[%s0 + $0x48] sm:$0xff]
  %v31 = vld [vmem:[%s0 + $0x50] sm:$0xff]
  %v32 = vld [vmem:[%s0 + $0x58] sm:$0xff]
  %v33 = vld [vmem:[%s0 + $0x60] sm:$0xff]
  %v34 = vld [vmem:[%s0 + $0x68] sm:$0xff]
  %v35 = vld [vmem:[%s0 + $0x70] sm:$0xff]
  %v36 = vld [vmem:[%s0 + $0x78] sm:$0xff]
  %vm37 = vcmask 261120
  %v38 = vsel %vm37, %v21, 0.0
  %39 = vadd.xlane.f32.xlu0 %v38
  %v40 = vpop.xlane.xlu0 %39
  %v41 = vsel %vm37, %v22, 0.0
  %42 = vadd.xlane.f32.xlu0 %v41
  %v43 = vpop.xlane.xlu0 %42
  %v44 = vsel %vm37, %v23, 0.0
  %45 = vadd.xlane.f32.xlu0 %v44
  %v46 = vpop.xlane.xlu0 %45
  %v47 = vsel %vm37, %v24, 0.0
  %48 = vadd.xlane.f32.xlu0 %v47
  %v49 = vpop.xlane.xlu0 %48
  %v50 = vsel %vm37, %v25, 0.0
  %51 = vadd.xlane.f32.xlu0 %v50
  %v52 = vpop.xlane.xlu0 %51
  %v53 = vsel %vm37, %v26, 0.0
  %54 = vadd.xlane.f32.xlu0 %v53
  %v55 = vpop.xlane.xlu0 %54
  %v56 = vsel %vm37, %v27, 0.0
  %57 = vadd.xlane.f32.xlu0 %v56
  %v58 = vpop.xlane.xlu0 %57
  %v59 = vsel %vm37, %v28, 0.0
  %60 = vadd.xlane.f32.xlu0 %v59
  %v61 = vpop.xlane.xlu0 %60
  %v62 = vsel %vm37, %v29, 0.0
  %63 = vadd.xlane.f32.xlu0 %v62
  %v64 = vpop.xlane.xlu0 %63
  %v65 = vsel %vm37, %v30, 0.0
  %66 = vadd.xlane.f32.xlu0 %v65
  %v67 = vpop.xlane.xlu0 %66
  %v68 = vsel %vm37, %v31, 0.0
  %69 = vadd.xlane.f32.xlu0 %v68
  %v70 = vpop.xlane.xlu0 %69
  %v71 = vsel %vm37, %v32, 0.0
  %72 = vadd.xlane.f32.xlu0 %v71
  %v73 = vpop.xlane.xlu0 %72
  %v74 = vsel %vm37, %v33, 0.0
  %75 = vadd.xlane.f32.xlu0 %v74
  %v76 = vpop.xlane.xlu0 %75
  %v77 = vsel %vm37, %v34, 0.0
  %78 = vadd.xlane.f32.xlu0 %v77
  %v79 = vpop.xlane.xlu0 %78
  %v80 = vsel %vm37, %v35, 0.0
  %81 = vadd.xlane.f32.xlu0 %v80
  %v82 = vpop.xlane.xlu0 %81
  %v83 = vsel %vm37, %v36, 0.0
  %84 = vadd.xlane.f32.xlu0 %v83
  %v85 = vpop.xlane.xlu0 %84
  %v86 = vrcp.pop 32.0
  %v87 = vmul.f32 %v40, %v86
  %v88 = vmul.f32 %v43, %v86
  %v89 = vmul.f32 %v46, %v86
  %v90 = vmul.f32 %v49, %v86
  %v91 = vmul.f32 %v52, %v86
  %v92 = vmul.f32 %v55, %v86
  %v93 = vmul.f32 %v58, %v86
  %v94 = vmul.f32 %v61, %v86
  %v95 = vmul.f32 %v64, %v86
  %v96 = vmul.f32 %v67, %v86
  %v97 = vmul.f32 %v70, %v86
  %v98 = vmul.f32 %v73, %v86
  %v99 = vmul.f32 %v76, %v86
  %v100 = vmul.f32 %v79, %v86
  %v101 = vmul.f32 %v82, %v86
  %v102 = vmul.f32 %v85, %v86
  %v103 = vsub.f32 %v21, %v87
  %v104 = vsub.f32 %v22, %v88
  %v105 = vsub.f32 %v23, %v89
  %v106 = vsub.f32 %v24, %v90
  %v107 = vsub.f32 %v25, %v91
  %v108 = vsub.f32 %v26, %v92
  %v109 = vsub.f32 %v27, %v93
  %v110 = vsub.f32 %v28, %v94
  %v111 = vsub.f32 %v29, %v95
  %v112 = vsub.f32 %v30, %v96
  %v113 = vsub.f32 %v31, %v97
  %v114 = vsub.f32 %v32, %v98
  %v115 = vsub.f32 %v33, %v99
  %v116 = vsub.f32 %v34, %v100
  %v117 = vsub.f32 %v35, %v101
  %v118 = vsub.f32 %v36, %v102
  %v119 = vmul.f32 %v103, %v103
  %v120 = vmul.f32 %v104, %v104
  %v121 = vmul.f32 %v105, %v105
  %v122 = vmul.f32 %v106, %v106
  %v123 = vmul.f32 %v107, %v107
  %v124 = vmul.f32 %v108, %v108
  %v125 = vmul.f32 %v109, %v109
  %v126 = vmul.f32 %v110, %v110
  %v127 = vmul.f32 %v111, %v111
  %v128 = vmul.f32 %v112, %v112
  %v129 = vmul.f32 %v113, %v113
  %v130 = vmul.f32 %v114, %v114
  %v131 = vmul.f32 %v115, %v115
  %v132 = vmul.f32 %v116, %v116
  %v133 = vmul.f32 %v117, %v117
  %v134 = vmul.f32 %v118, %v118
  %v135 = vsel %vm37, %v119, 0.0
  %136 = vadd.xlane.f32.xlu0 %v135
  %v137 = vpop.xlane.xlu0 %136
  %v138 = vsel %vm37, %v120, 0.0
  %139 = vadd.xlane.f32.xlu0 %v138
  %v140 = vpop.xlane.xlu0 %139
  %v141 = vsel %vm37, %v121, 0.0
  %142 = vadd.xlane.f32.xlu0 %v141
  %v143 = vpop.xlane.xlu0 %142
  %v144 = vsel %vm37, %v122, 0.0
  %145 = vadd.xlane.f32.xlu0 %v144
  %v146 = vpop.xlane.xlu0 %145
  %v147 = vsel %vm37, %v123, 0.0
  %148 = vadd.xlane.f32.xlu0 %v147
  %v149 = vpop.xlane.xlu0 %148
  %v150 = vsel %vm37, %v124, 0.0
  %151 = vadd.xlane.f32.xlu0 %v150
  %v152 = vpop.xlane.xlu0 %151
  %v153 = vsel %vm37, %v125, 0.0
  %154 = vadd.xlane.f32.xlu0 %v153
  %v155 = vpop.xlane.xlu0 %154
  %v156 = vsel %vm37, %v126, 0.0
  %157 = vadd.xlane.f32.xlu0 %v156
  %v158 = vpop.xlane.xlu0 %157
  %v159 = vsel %vm37, %v127, 0.0
  %160 = vadd.xlane.f32.xlu0 %v159
  %v161 = vpop.xlane.xlu0 %160
  %v162 = vsel %vm37, %v128, 0.0
  %163 = vadd.xlane.f32.xlu0 %v162
  %v164 = vpop.xlane.xlu0 %163
  %v165 = vsel %vm37, %v129, 0.0
  %166 = vadd.xlane.f32.xlu0 %v165
  %v167 = vpop.xlane.xlu0 %166
  %v168 = vsel %vm37, %v130, 0.0
  %169 = vadd.xlane.f32.xlu0 %v168
  %v170 = vpop.xlane.xlu0 %169
  %v171 = vsel %vm37, %v131, 0.0
  %172 = vadd.xlane.f32.xlu0 %v171
  %v173 = vpop.xlane.xlu0 %172
  %v174 = vsel %vm37, %v132, 0.0
  %175 = vadd.xlane.f32.xlu0 %v174
  %v176 = vpop.xlane.xlu0 %175
  %v177 = vsel %vm37, %v133, 0.0
  %178 = vadd.xlane.f32.xlu0 %v177
  %v179 = vpop.xlane.xlu0 %178
  %v180 = vsel %vm37, %v134, 0.0
  %181 = vadd.xlane.f32.xlu0 %v180
  %v182 = vpop.xlane.xlu0 %181
  %v183 = vmul.f32 %v137, %v86
  %v184 = vmul.f32 %v140, %v86
  %v185 = vmul.f32 %v143, %v86
  %v186 = vmul.f32 %v146, %v86
  %v187 = vmul.f32 %v149, %v86
  %v188 = vmul.f32 %v152, %v86
  %v189 = vmul.f32 %v155, %v86
  %v190 = vmul.f32 %v158, %v86
  %v191 = vmul.f32 %v161, %v86
  %v192 = vmul.f32 %v164, %v86
  %v193 = vmul.f32 %v167, %v86
  %v194 = vmul.f32 %v170, %v86
  %v195 = vmul.f32 %v173, %v86
  %v196 = vmul.f32 %v176, %v86
  %v197 = vmul.f32 %v179, %v86
  %v198 = vmul.f32 %v182, %v86
  %v199 = vadd.f32 %v183, 1e-05
  %v200 = vadd.f32 %v184, 1e-05
  %v201 = vadd.f32 %v185, 1e-05
  %v202 = vadd.f32 %v186, 1e-05
  %v203 = vadd.f32 %v187, 1e-05
  %v204 = vadd.f32 %v188, 1e-05
  %v205 = vadd.f32 %v189, 1e-05
  %v206 = vadd.f32 %v190, 1e-05
  %v207 = vadd.f32 %v191, 1e-05
  %v208 = vadd.f32 %v192, 1e-05
  %v209 = vadd.f32 %v193, 1e-05
  %v210 = vadd.f32 %v194, 1e-05
  %v211 = vadd.f32 %v195, 1e-05
  %v212 = vadd.f32 %v196, 1e-05
  %v213 = vadd.f32 %v197, 1e-05
  %v214 = vadd.f32 %v198, 1e-05
  %v215 = vrsqrt.pop %v199
  %v216 = vrsqrt.pop %v200
  %v217 = vrsqrt.pop %v201
  %v218 = vrsqrt.pop %v202
  %v219 = vrsqrt.pop %v203
  %v220 = vrsqrt.pop %v204
  %v221 = vrsqrt.pop %v205
  %v222 = vrsqrt.pop %v206
  %v223 = vrsqrt.pop %v207
  %v224 = vrsqrt.pop %v208
  %v225 = vrsqrt.pop %v209
  %v226 = vrsqrt.pop %v210
  %v227 = vrsqrt.pop %v211
  %v228 = vrsqrt.pop %v212
  %v229 = vrsqrt.pop %v213
  %v230 = vrsqrt.pop %v214
  %v231 = vmul.f32 %v103, %v215
  %v232 = vmul.f32 %v104, %v216
  %v233 = vmul.f32 %v105, %v217
  %v234 = vmul.f32 %v106, %v218
  %v235 = vmul.f32 %v107, %v219
  %v236 = vmul.f32 %v108, %v220
  %v237 = vmul.f32 %v109, %v221
  %v238 = vmul.f32 %v110, %v222
  %v239 = vmul.f32 %v111, %v223
  %v240 = vmul.f32 %v112, %v224
  %v241 = vmul.f32 %v113, %v225
  %v242 = vmul.f32 %v114, %v226
  %v243 = vmul.f32 %v115, %v227
  %v244 = vmul.f32 %v116, %v228
  %v245 = vmul.f32 %v117, %v229
  %v246 = vmul.f32 %v118, %v230
  %v247 = vpack.c.bf16 %v232, %v231
  %v248 = vpack.c.bf16 %v234, %v233
  %v249 = vpack.c.bf16 %v236, %v235
  %v250 = vpack.c.bf16 %v238, %v237
  %v251 = vpack.c.bf16 %v240, %v239
  %v252 = vpack.c.bf16 %v242, %v241
  %v253 = vpack.c.bf16 %v244, %v243
  %v254 = vpack.c.bf16 %v246, %v245
  %v255 = vld [vmem:[%s2] sm:$0xf]
  %v256 = vld [vmem:[%s2 + $0x4] sm:$0xf]
  %v257 = vld [vmem:[%s2 + $0x8] sm:$0xf]
  %v258 = vld [vmem:[%s2 + $0xc] sm:$0xf]
  %v263 = vunpack.c.l.b16 %v255
  %v264 = vunpack.c.l.b16 %v256
  %v265 = vunpack.c.l.b16 %v257
  %v266 = vunpack.c.l.b16 %v258
  %v267 = vpack.c.b16 %v264, %v263
  %v268 = vpack.c.b16 %v266, %v265
  %v272 = vsel %vm37, %v247, 0
  %v275 = vsel %vm37, %v248, 0
  %v278 = vsel %vm37, %v249, 0
  %v281 = vsel %vm37, %v250, 0
  %v284 = vsel %vm37, %v251, 0
  %v287 = vsel %vm37, %v252, 0
  %v290 = vsel %vm37, %v253, 0
  %v293 = vsel %vm37, %v254, 0
  %295 = vmatprep.subr.bf16.mxu0 0
  %296 = vmatpush1.bf16.msra.mxu0 %v267
  %297 = vmatprep.subr.bf16.mxu0 0
  %298 = vmatpush1.bf16.msra.mxu0 %v268
  %299 = vmatprep.subr.bf16.mxu0 0
  %300 = vmatpush1.bf16.msra.mxu0 0
  %301 = vmatprep.subr.bf16.mxu0 0
  %302 = vmatpush1.bf16.msra.mxu0 0
  %303 = vmatprep.subr.bf16.mxu0 0
  %304 = vmatpush1.bf16.msra.mxu0 0
  %305 = vmatprep.subr.bf16.mxu0 0
  %306 = vmatpush1.bf16.msra.mxu0 0
  %307 = vmatprep.subr.bf16.mxu0 0
  %308 = vmatpush1.bf16.msra.mxu0 0
  %309 = vmatprep.subr.bf16.mxu0 0
  %310 = vmatpush1.bf16.msra.mxu0 0
  %311 = vmatprep.subr.bf16.mxu0 0
  %312 = vmatpush1.bf16.msra.mxu0 0
  %313 = vmatprep.subr.bf16.mxu0 0
  %314 = vmatpush1.bf16.msra.mxu0 0
  %315 = vmatprep.subr.bf16.mxu0 0
  %316 = vmatpush1.bf16.msra.mxu0 0
  %317 = vmatprep.subr.bf16.mxu0 0
  %318 = vmatpush1.bf16.msra.mxu0 0
  %319 = vmatprep.subr.bf16.mxu0 0
  %320 = vmatpush1.bf16.msra.mxu0 0
  %321 = vmatprep.subr.bf16.mxu0 0
  %322 = vmatpush1.bf16.msra.mxu0 0
  %323 = vmatprep.subr.bf16.mxu0 0
  %324 = vmatpush1.bf16.msra.mxu0 0
  %325 = vmatprep.subr.bf16.mxu0 0
  %326 = vmatpush1.bf16.msra.mxu0 0
  %327 = vmatprep.mubr.bf16.mxu0 0
  %328 = vmatmul.mubr.bf16.gmra.mrb[0].mxu0 %v272
  %v329 = vpop.f32.mrb[0].mxu0
  %v330 = vadd.f32 0.0, %v329
  %v331 = vpop.f32.mrb[0].mxu0
  %v332 = vpop.f32.mrb[0].mxu0
  %v333 = vadd.f32 0.0, %v332
  %v334 = vpop.f32.mrb[0].mxu0
  %335 = vmatprep.mubr.bf16.mxu0 0
  %336 = vmatmul.mubr.bf16.gmra.mrb[0].mxu0 %v275
  %v337 = vpop.f32.mrb[0].mxu0
  %v338 = vadd.f32 0.0, %v337
  %v339 = vpop.f32.mrb[0].mxu0
  %v340 = vpop.f32.mrb[0].mxu0
  %v341 = vadd.f32 0.0, %v340
  %v342 = vpop.f32.mrb[0].mxu0
  %343 = vmatprep.mubr.bf16.mxu0 0
  %344 = vmatmul.mubr.bf16.gmra.mrb[0].mxu0 %v278
  %v345 = vpop.f32.mrb[0].mxu0
  %v346 = vadd.f32 0.0, %v345
  %v347 = vpop.f32.mrb[0].mxu0
  %v348 = vpop.f32.mrb[0].mxu0
  %v349 = vadd.f32 0.0, %v348
  %v350 = vpop.f32.mrb[0].mxu0
  %351 = vmatprep.mubr.bf16.mxu0 0
  %352 = vmatmul.mubr.bf16.gmra.mrb[0].mxu0 %v281
  %v353 = vpop.f32.mrb[0].mxu0
  %v354 = vadd.f32 0.0, %v353
  %v355 = vpop.f32.mrb[0].mxu0
  %v356 = vpop.f32.mrb[0].mxu0
  %v357 = vadd.f32 0.0, %v356
  %v358 = vpop.f32.mrb[0].mxu0
  %359 = vmatprep.mubr.bf16.mxu0 0
  %360 = vmatmul.mubr.bf16.gmra.mrb[0].mxu0 %v284
  %v361 = vpop.f32.mrb[0].mxu0
  %v362 = vadd.f32 0.0, %v361
  %v363 = vpop.f32.mrb[0].mxu0
  %v364 = vpop.f32.mrb[0].mxu0
  %v365 = vadd.f32 0.0, %v364
  %v366 = vpop.f32.mrb[0].mxu0
  %367 = vmatprep.mubr.bf16.mxu0 0
  %368 = vmatmul.mubr.bf16.gmra.mrb[0].mxu0 %v287
  %v369 = vpop.f32.mrb[0].mxu0
  %v370 = vadd.f32 0.0, %v369
  %v371 = vpop.f32.mrb[0].mxu0
  %v372 = vpop.f32.mrb[0].mxu0
  %v373 = vadd.f32 0.0, %v372
  %v374 = vpop.f32.mrb[0].mxu0
  %375 = vmatprep.mubr.bf16.mxu0 0
  %376 = vmatmul.mubr.bf16.gmra.mrb[0].mxu0 %v290
  %v377 = vpop.f32.mrb[0].mxu0
  %v378 = vadd.f32 0.0, %v377
  %v379 = vpop.f32.mrb[0].mxu0
  %v380 = vpop.f32.mrb[0].mxu0
  %v381 = vadd.f32 0.0, %v380
  %v382 = vpop.f32.mrb[0].mxu0
  %383 = vmatprep.mubr.bf16.mxu0 0
  %384 = vmatmul.mubr.bf16.gmra.mrb[0].mxu0 %v293
  %v385 = vpop.f32.mrb[0].mxu0
  %v386 = vadd.f32 0.0, %v385
  %v387 = vpop.f32.mrb[0].mxu0
  %v388 = vpop.f32.mrb[0].mxu0
  %v389 = vadd.f32 0.0, %v388
  %v390 = vpop.f32.mrb[0].mxu0
  %391 = vdwg.mxu0
  %v392 = vld [vmem:[%s1] sm:$0x1]
  %v393 = vlaneseq
  %v394 = vshrl.u32 %v393, 7
  %v395 = vlaneseq
  %v396 = vshrl.u32 %v395, 7
  %v397 = vsub.s32 0, %v396
  %v398 = vrot.slane %v392, %v397
  %vm399 = vcmp.eq.s32.totalorder %v394, %v398
  %v400 = vsel %vm399, 1, 0
  %v401 = vcvt.s32.f32 %v400
  %v402 = vpack.c.bf16 %v401, %v401
  %s403 = smul.u32 0, 128
  %s404 = smul.u32 0, 128
  %s405 = sadd.s32 %s403, 128
  %p406 = scmp.gt.s32.totalorder %s405, 8
  %p407 = scmp.lt.s32.totalorder %s403, %s404
  %p408 = por %p406, %p407
  // Predicated region
  $region18: #{tpu_custom_call.1} parent=0 // pred_check
    %p409 = pneg %p408
  $region19: #{tpu_custom_call.1} parent=0 // pred_check_branch
    %411 = sbr.rel (%p409) target = $region21
  $region20: #{tpu_custom_call.1} parent=0 // pred_region
    %v412 = vadd.s32 %v394, 8
    %v413 = vadd.s32 %v394, 16
    %v414 = vadd.s32 %v394, 24
    %v415 = vadd.s32 %v394, 32
    %v416 = vadd.s32 %v394, 40
    %v417 = vadd.s32 %v394, 48
    %v418 = vadd.s32 %v394, 56
    %v419 = vadd.s32 %v394, 64
    %v420 = vadd.s32 %v394, 72
    %v421 = vadd.s32 %v394, 80
    %v422 = vadd.s32 %v394, 88
    %v423 = vadd.s32 %v394, 96
    %v424 = vadd.s32 %v394, 104
    %v425 = vadd.s32 %v394, 112
    %v426 = vadd.s32 %v394, 120
    %v427 = vstv %s403
    %v428 = vadd.s32 %v427, %v394
    %v429 = vadd.s32 %v427, %v412
    %v430 = vadd.s32 %v427, %v413
    %v431 = vadd.s32 %v427, %v414
    %v432 = vadd.s32 %v427, %v415
    %v433 = vadd.s32 %v427, %v416
    %v434 = vadd.s32 %v427, %v417
    %v435 = vadd.s32 %v427, %v418
    %v436 = vadd.s32 %v427, %v419
    %v437 = vadd.s32 %v427, %v420
    %v438 = vadd.s32 %v427, %v421
    %v439 = vadd.s32 %v427, %v422
    %v440 = vadd.s32 %v427, %v423
    %v441 = vadd.s32 %v427, %v424
    %v442 = vadd.s32 %v427, %v425
    %v443 = vadd.s32 %v427, %v426
    %v444 = vstv %s404
    %vm445 = vcmp.ge.s32.totalorder %v428, %v444
    %vm446 = vcmp.ge.s32.totalorder %v429, %v444
    %vm447 = vcmp.ge.s32.totalorder %v430, %v444
    %vm448 = vcmp.ge.s32.totalorder %v431, %v444
    %vm449 = vcmp.ge.s32.totalorder %v432, %v444
    %vm450 = vcmp.ge.s32.totalorder %v433, %v444
    %vm451 = vcmp.ge.s32.totalorder %v434, %v444
    %vm452 = vcmp.ge.s32.totalorder %v435, %v444
    %vm453 = vcmp.ge.s32.totalorder %v436, %v444
    %vm454 = vcmp.ge.s32.totalorder %v437, %v444
    %vm455 = vcmp.ge.s32.totalorder %v438, %v444
    %vm456 = vcmp.ge.s32.totalorder %v439, %v444
    %vm457 = vcmp.ge.s32.totalorder %v440, %v444
    %vm458 = vcmp.ge.s32.totalorder %v441, %v444
    %vm459 = vcmp.ge.s32.totalorder %v442, %v444
    %vm460 = vcmp.ge.s32.totalorder %v443, %v444
    %vm461 = vcmp.lt.s32.totalorder %v428, 8
    %vm462 = vcmp.lt.s32.totalorder %v429, 8
    %vm463 = vcmp.lt.s32.totalorder %v430, 8
    %vm464 = vcmp.lt.s32.totalorder %v431, 8
    %vm465 = vcmp.lt.s32.totalorder %v432, 8
    %vm466 = vcmp.lt.s32.totalorder %v433, 8
    %vm467 = vcmp.lt.s32.totalorder %v434, 8
    %vm468 = vcmp.lt.s32.totalorder %v435, 8
    %vm469 = vcmp.lt.s32.totalorder %v436, 8
    %vm470 = vcmp.lt.s32.totalorder %v437, 8
    %vm471 = vcmp.lt.s32.totalorder %v438, 8
    %vm472 = vcmp.lt.s32.totalorder %v439, 8
    %vm473 = vcmp.lt.s32.totalorder %v440, 8
    %vm474 = vcmp.lt.s32.totalorder %v441, 8
    %vm475 = vcmp.lt.s32.totalorder %v442, 8
    %vm476 = vcmp.lt.s32.totalorder %v443, 8
    %vm477 = vmand %vm445, %vm461
    %vm478 = vmand %vm446, %vm462
    %vm479 = vmand %vm447, %vm463
    %vm480 = vmand %vm448, %vm464
    %vm481 = vmand %vm449, %vm465
    %vm482 = vmand %vm450, %vm466
    %vm483 = vmand %vm451, %vm467
    %vm484 = vmand %vm452, %vm468
    %vm485 = vmand %vm453, %vm469
    %vm486 = vmand %vm454, %vm470
    %vm487 = vmand %vm455, %vm471
    %vm488 = vmand %vm456, %vm472
    %vm489 = vmand %vm457, %vm473
    %vm490 = vmand %vm458, %vm474
    %vm491 = vmand %vm459, %vm475
    %vm492 = vmand %vm460, %vm476
    %v493 = vsel %vm477, %v330, 0.0
    %v494 = vsel %vm478, %v333, 0.0
    %v495 = vsel %vm479, %v338, 0.0
    %v496 = vsel %vm480, %v341, 0.0
    %v497 = vsel %vm481, %v346, 0.0
    %v498 = vsel %vm482, %v349, 0.0
    %v499 = vsel %vm483, %v354, 0.0
    %v500 = vsel %vm484, %v357, 0.0
    %v501 = vsel %vm485, %v362, 0.0
    %v502 = vsel %vm486, %v365, 0.0
    %v503 = vsel %vm487, %v370, 0.0
    %v504 = vsel %vm488, %v373, 0.0
    %v505 = vsel %vm489, %v378, 0.0
    %v506 = vsel %vm490, %v381, 0.0
    %v507 = vsel %vm491, %v386, 0.0
    %v508 = vsel %vm492, %v389, 0.0
    %v509 = vpack.c.bf16 %v494, %v493
    %v510 = vpack.c.bf16 %v496, %v495
    %v511 = vpack.c.bf16 %v498, %v497
    %v512 = vpack.c.bf16 %v500, %v499
    %v513 = vpack.c.bf16 %v502, %v501
    %v514 = vpack.c.bf16 %v504, %v503
    %v515 = vpack.c.bf16 %v506, %v505
    %v516 = vpack.c.bf16 %v508, %v507
    %v517 = vld [vmem:[#allocation2] sm:$0xff]
    %518 = vmatprep.subr.bf16.mxu0 0
    %519 = vmatpush1.bf16.msra.mxu0 %v509
    %520 = vmatprep.subr.bf16.mxu0 0
    %521 = vmatpush1.bf16.msra.mxu0 %v510
    %522 = vmatprep.subr.bf16.mxu0 0
    %523 = vmatpush1.bf16.msra.mxu0 %v511
    %524 = vmatprep.subr.bf16.mxu0 0
    %525 = vmatpush1.bf16.msra.mxu0 %v512
    %526 = vmatprep.subr.bf16.mxu0 0
    %527 = vmatpush1.bf16.msra.mxu0 %v513
    %528 = vmatprep.subr.bf16.mxu0 0
    %529 = vmatpush1.bf16.msra.mxu0 %v514
    %530 = vmatprep.subr.bf16.mxu0 0
    %531 = vmatpush1.bf16.msra.mxu0 %v515
    %532 = vmatprep.subr.bf16.mxu0 0
    %533 = vmatpush1.bf16.msra.mxu0 %v516
    %534 = vmatprep.subr.bf16.mxu0 0
    %535 = vmatpush1.bf16.msra.mxu0 0
    %536 = vmatprep.subr.bf16.mxu0 0
    %537 = vmatpush1.bf16.msra.mxu0 0
    %538 = vmatprep.subr.bf16.mxu0 0
    %539 = vmatpush1.bf16.msra.mxu0 0
    %540 = vmatprep.subr.bf16.mxu0 0
    %541 = vmatpush1.bf16.msra.mxu0 0
    %542 = vmatprep.subr.bf16.mxu0 0
    %543 = vmatpush1.bf16.msra.mxu0 0
    %544 = vmatprep.subr.bf16.mxu0 0
    %545 = vmatpush1.bf16.msra.mxu0 0
    %546 = vmatprep.subr.bf16.mxu0 0
    %547 = vmatpush1.bf16.msra.mxu0 0
    %548 = vmatprep.subr.bf16.mxu0 0
    %549 = vmatpush1.bf16.msra.mxu0 0
    %550 = vmatprep.mubr.bf16.mxu0 0
    %551 = vmatmul.mubr.bf16.gmra.mrb[0].mxu0 %v402
    %v552 = vpop.f32.mrb[0].mxu0
    %v553 = vadd.f32 0.0, %v552
    %v554 = vpop.f32.mrb[0].mxu0
    %v555 = vpop.f32.mrb[0].mxu0
    %v556 = vpop.f32.mrb[0].mxu0
    %557 = vdwg.mxu0
    %v558 = vadd.f32 %v517, %v553
    %vm559 = vcmask 7168
    %560 = vst.msk [vmem:[#allocation2] sm:$0xff] %vm559, %v558
  $region21: #{tpu_custom_call.1} parent=0 // pred_fallthru
    _
  %p561 = pneg %p408
  // Predicated region
  $region22: #{tpu_custom_call.1} parent=0 // pred_check
    _
  $region23: #{tpu_custom_call.1} parent=0 // pred_check_branch
    %563 = sbr.rel (%p408) target = $region25
  $region24: #{tpu_custom_call.1} parent=0 // pred_region
    %v564 = vpack.c.bf16 %v333, %v330
    %v565 = vpack.c.bf16 %v341, %v338
    %v566 = vpack.c.bf16 %v349, %v346
    %v567 = vpack.c.bf16 %v357, %v354
    %v568 = vpack.c.bf16 %v365, %v362
    %v569 = vpack.c.bf16 %v373, %v370
    %v570 = vpack.c.bf16 %v381, %v378
    %v571 = vpack.c.bf16 %v389, %v386
    %v572 = vld [vmem:[#allocation2] sm:$0xff]
    %573 = vmatprep.subr.bf16.mxu0 0
    %574 = vmatpush1.bf16.msra.mxu0 %v564
    %575 = vmatprep.subr.bf16.mxu0 0
    %576 = vmatpush1.bf16.msra.mxu0 %v565
    %577 = vmatprep.subr.bf16.mxu0 0
    %578 = vmatpush1.bf16.msra.mxu0 %v566
    %579 = vmatprep.subr.bf16.mxu0 0
    %580 = vmatpush1.bf16.msra.mxu0 %v567
    %581 = vmatprep.subr.bf16.mxu0 0
    %582 = vmatpush1.bf16.msra.mxu0 %v568
    %583 = vmatprep.subr.bf16.mxu0 0
    %584 = vmatpush1.bf16.msra.mxu0 %v569
    %585 = vmatprep.subr.bf16.mxu0 0
    %586 = vmatpush1.bf16.msra.mxu0 %v570
    %587 = vmatprep.subr.bf16.mxu0 0
    %588 = vmatpush1.bf16.msra.mxu0 %v571
    %589 = vmatprep.subr.bf16.mxu0 0
    %590 = vmatpush1.bf16.msra.mxu0 0
    %591 = vmatprep.subr.bf16.mxu0 0
    %592 = vmatpush1.bf16.msra.mxu0 0
    %593 = vmatprep.subr.bf16.mxu0 0
    %594 = vmatpush1.bf16.msra.mxu0 0
    %595 = vmatprep.subr.bf16.mxu0 0
    %596 = vmatpush1.bf16.msra.mxu0 0
    %597 = vmatprep.subr.bf16.mxu0 0
    %598 = vmatpush1.bf16.msra.mxu0 0
    %599 = vmatprep.subr.bf16.mxu0 0
    %600 = vmatpush1.bf16.msra.mxu0 0
    %601 = vmatprep.subr.bf16.mxu0 0
    %602 = vmatpush1.bf16.msra.mxu0 0
    %603 = vmatprep.subr.bf16.mxu0 0
    %604 = vmatpush1.bf16.msra.mxu0 0
    %605 = vmatprep.mubr.bf16.mxu0 0
    %606 = vmatmul.mubr.bf16.gmra.mrb[0].mxu0 %v402
    %v607 = vpop.f32.mrb[0].mxu0
    %v608 = vadd.f32 0.0, %v607
    %v609 = vpop.f32.mrb[0].mxu0
    %v610 = vpop.f32.mrb[0].mxu0
    %v611 = vpop.f32.mrb[0].mxu0
    %612 = vdwg.mxu0
    %v613 = vadd.f32 %v572, %v608
    %vm614 = vcmask 7168
    %615 = vst.msk [vmem:[#allocation2] sm:$0xff] %vm614, %v613
  $region25: #{tpu_custom_call.1} parent=0 // pred_fallthru
    _
  // Predicated region
  $region26: #{tpu_custom_call.1} parent=0 // pred_check
    %p616 = pneg %p15
  $region27: #{tpu_custom_call.1} parent=0 // pred_check_branch
    %618 = sbr.rel (%p616) target = $region29
  $region28: #{tpu_custom_call.1} parent=0 // pred_region
    %v619 = vld [vmem:[#allocation2] sm:$0xff]
    %vm620 = vcmask 7168
    %621 = vst.msk [vmem:[%s3] sm:$0xff] %vm620, %v619
  $region29: #{tpu_custom_call.1} parent=0 // pred_fallthru
    _
  // Predicated region
  $region30: #{tpu_custom_call.1} parent=0 // pred_check
    _
  $region31: #{tpu_custom_call.1} parent=0 // pred_check_branch
    %623 = sbr.rel (0) target = $region33
  $region32: #{tpu_custom_call.1} parent=0 // pred_region
    _
  $region33: #{tpu_custom_call.1} parent=0 // pred_fallthru
    _
  // Predicated region
  $region34: #{tpu_custom_call.1} parent=0 // pred_check
    _
  $region35: #{tpu_custom_call.1} parent=0 // pred_check_branch
    %625 = sbr.rel (0) target = $region37
  $region36: #{tpu_custom_call.1} parent=0 // pred_region
    _
  $region37: #{tpu_custom_call.1} parent=0 // pred_fallthru
    _

</llo_original>
